<compile_context>
chip_gen: v7x
topology: tpu7x:2x2x1
jax: 0.10.0
libtpu: 0.0.40
codegen_flags: <defaults>
</compile_context>

<pallas_src>
import functools

import numpy as np
import jax
import jax.numpy as jnp
from jax.experimental import pallas as pl
from jax.experimental.pallas import tpu as pltpu

IGNORE_INDEX = 255


# --------------------------------------------------------------------------
# helpers
# --------------------------------------------------------------------------
def _round_up(x, m):
    return -(-x // m) * m


def _vmem_limit_bytes():
    """Generation-aware scoped-VMEM limit with headroom under physical VMEM."""
    try:
        cap = int(pltpu.get_tpu_info().vmem_capacity_bytes)
    except Exception:
        cap = 64 << 20                       # conservative (v7x-sized) fallback
    # v5e/v6e (128 MiB) -> 96 MiB; v7x (64 MiB) -> 48 MiB.
    return max(16 << 20, min((cap * 3) // 4, 96 << 20))


def _choose_th(H, per_row_bytes, budget_bytes):
    """Largest H-tile (multiple of 8, dividing H) whose per-step footprint
    (double-buffered inputs + f32 working set) fits the budget."""
    assert H % 8 == 0, "pad H to a multiple of 8 before tiling"
    best = 8
    for t in range(8, H + 1, 8):
        if H % t == 0 and t * per_row_bytes <= budget_bytes:
            best = max(best, t)
    return best


def _fold8(x):
    """(TH, W) -> (8, W) partial sums with VPU-only adds (TH % 8 == 0).

    Splitting the sublane axis by 8 matches the vreg layout, so the reshape is
    free and the reduction is plain element-wise vreg adds (no XLU)."""
    th, w = x.shape
    return jnp.sum(x.reshape(th // 8, 8, w), axis=0)


# --------------------------------------------------------------------------
# Kernel 1: fused cross-entropy for (labels, ex_labels) in a single sweep
#   logits block (1, C, TH, W); labels / ex_labels blocks (1, TH, W)
#   outputs: per-image (1, 8, W) partial accumulators (sum, cnt) x 2
# --------------------------------------------------------------------------
def _ce2_kernel(logits_ref, lab_ref, exlab_ref,
                ce_sum_ref, ce_cnt_ref, ex_sum_ref, ex_cnt_ref,
                *, ignore_index, num_classes):
    @pl.when(pl.program_id(1) == 0)
    def _init():
        ce_sum_ref[...] = jnp.zeros_like(ce_sum_ref)
        ce_cnt_ref[...] = jnp.zeros_like(ce_cnt_ref)
        ex_sum_ref[...] = jnp.zeros_like(ex_sum_ref)
        ex_cnt_ref[...] = jnp.zeros_like(ex_cnt_ref)

    lab = lab_ref[0]                       # (TH, W) int32
    exlab = exlab_ref[0]                   # (TH, W) int32

    def plane(c):                          # re-read per pass; no f32 plane list
        return logits_ref[0, c, :, :].astype(jnp.float32)

    # pass 1: class max (W stays lane-dense; short unrolled loop over C)
    m = plane(0)
    for c in range(1, num_classes):
        m = jnp.maximum(m, plane(c))

    # pass 2: exp-sum + label / ex-label logit selects
    s = jnp.zeros_like(m)
    lab_logit = jnp.zeros_like(m)
    ex_logit = jnp.zeros_like(m)
    for c in range(num_classes):
        xc = plane(c)
        s = s + jnp.exp(xc - m)
        lab_logit = jnp.where(lab == c, xc, lab_logit)
        ex_logit = jnp.where(exlab == c, xc, ex_logit)
    lse = m + jnp.log(s)

    valid = lab != ignore_index
    ex_valid = exlab != ignore_index
    loss = jnp.where(valid, lse - lab_logit, 0.0)
    ex_loss = jnp.where(ex_valid, lse - ex_logit, 0.0)

    # per-n (8, W) partial accumulators; cross-lane reduce deferred to wrapper
    ce_sum_ref[...] += _fold8(loss)[None]
    ce_cnt_ref[...] += _fold8(valid.astype(jnp.float32))[None]
    ex_sum_ref[...] += _fold8(ex_loss)[None]
    ex_cnt_ref[...] += _fold8(ex_valid.astype(jnp.float32))[None]


def _fused_ce(logits_nchw, labels_nhw, ex_labels_nhw, ignore_index, vmem_limit):
    """PyTorch nn.CrossEntropyLoss(ignore_index, reduction='mean') for two
    label maps sharing the same logits; logits are read from HBM exactly once."""
    N, C, H, W = logits_nchw.shape
    itemsize = jnp.dtype(logits_nchw.dtype).itemsize
    # per H-row footprint: 2x double-buffered logits + 2 double-buffered int32
    # label rows + ~10 live f32 working planes inside the kernel.
    per_row = 2 * C * W * itemsize + 2 * 2 * W * 4 + 10 * W * 4
    TH = _choose_th(H, per_row, vmem_limit // 2)
    grid = (N, H // TH)

    kernel = functools.partial(_ce2_kernel, ignore_index=ignore_index,
                               num_classes=C)
    acc_shape = jax.ShapeDtypeStruct((N, 8, W), jnp.float32)
    acc_spec = pl.BlockSpec((1, 8, W), lambda n, h: (n, 0, 0))
    outs = pl.pallas_call(
        kernel,
        out_shape=(acc_shape,) * 4,
        grid=grid,
        in_specs=[pl.BlockSpec((1, C, TH, W), lambda n, h: (n, 0, h, 0)),
                  pl.BlockSpec((1, TH, W), lambda n, h: (n, h, 0)),
                  pl.BlockSpec((1, TH, W), lambda n, h: (n, h, 0))],
        out_specs=(acc_spec,) * 4,
        compiler_params=pltpu.CompilerParams(
            dimension_semantics=("parallel", "arbitrary"),
            vmem_limit_bytes=vmem_limit),
    )(logits_nchw, labels_nhw.astype(jnp.int32), ex_labels_nhw.astype(jnp.int32))

    ce_sum, ce_cnt, ex_sum, ex_cnt = (jnp.sum(o) for o in outs)
    # No cnt==0 guard: matches PyTorch (NaN when every pixel is ignored).
    return ce_sum / ce_cnt, ex_sum / ex_cnt


# --------------------------------------------------------------------------
# Kernel 2: batched pair losses (MSE + symmetric pseudo-label CE)
#   a/b blocks (1, C, TH, Wov); per-pixel weight block (1, TH, Wov)
#   weight = 1/(h*w) inside the pair's overlap, 0 elsewhere -> per-pair means
# --------------------------------------------------------------------------
def _pair_kernel(a_ref, b_ref, w_ref, mse_ref, ce12_ref, ce21_ref,
                 *, num_classes):
    @pl.when(pl.program_id(1) == 0)
    def _init():
        mse_ref[...] = jnp.zeros_like(mse_ref)
        ce12_ref[...] = jnp.zeros_like(ce12_ref)
        ce21_ref[...] = jnp.zeros_like(ce21_ref)

    w = w_ref[0]                                      # (TH, Wov) f32 weights

    def plane(ref, c):                                # re-read per pass
        return ref[0, c, :, :].astype(jnp.float32)

    # single fused class pass: MSE diff, running max, and the cross
    # pseudo-label selects a[argmax b] / b[argmax a] (first-max tie-break,
    # matching torch.argmax).  No int32 argmax planes, no extra select pass.
    a0 = plane(a_ref, 0)
    b0 = plane(b_ref, 0)
    d = a0 - b0
    sq = d * d
    ma, mb = a0, b0
    a_at_ib, b_at_ia = a0, b0
    for c in range(1, num_classes):
        ac = plane(a_ref, c)
        bc = plane(b_ref, c)
        d = ac - bc
        sq = sq + d * d
        gt_a = ac > ma
        gt_b = bc > mb
        a_at_ib = jnp.where(gt_b, ac, a_at_ib)   # img_1 logit at img_2's label
        b_at_ia = jnp.where(gt_a, bc, b_at_ia)   # img_2 logit at img_1's label
        ma = jnp.where(gt_a, ac, ma)
        mb = jnp.where(gt_b, bc, mb)

    # second pass: exp-sums (EUP) for both operands' log-sum-exp
    sa = jnp.zeros_like(w)
    sb = jnp.zeros_like(w)
    for c in range(num_classes):
        sa = sa + jnp.exp(plane(a_ref, c) - ma)
        sb = sb + jnp.exp(plane(b_ref, c) - mb)
    lse_a = ma + jnp.log(sa)
    lse_b = mb + jnp.log(sb)

    mse_ref[...] += (_fold8(sq * w) * (1.0 / num_classes))[None]
    ce12_ref[...] += _fold8((lse_a - a_at_ib) * w)[None]
    ce21_ref[...] += _fold8((lse_b - b_at_ia) * w)[None]


def _pair_losses_batched(a_b, b_b, w_b, vmem_limit):
    """a_b/b_b: (P, C, Hov, Wov) overlap logits zero-padded to the max overlap
    footprint; w_b: (P, Hov, Wov) per-pixel weights (1/(h*w) inside, 0 outside).
    Returns summed-over-pairs (mse_mean, ce12_mean, ce21_mean)."""
    P, C, Hov, Wov = a_b.shape
    itemsize = jnp.dtype(a_b.dtype).itemsize
    per_row = 2 * 2 * C * Wov * itemsize + 2 * Wov * 4 + 12 * Wov * 4
    TH = _choose_th(Hov, per_row, vmem_limit // 2)
    grid = (P, Hov // TH)

    kernel = functools.partial(_pair_kernel, num_classes=C)
    acc_shape = jax.ShapeDtypeStruct((P, 8, Wov), jnp.float32)
    acc_spec = pl.BlockSpec((1, 8, Wov), lambda p, h: (p, 0, 0))
    outs = pl.pallas_call(
        kernel,
        out_shape=(acc_shape,) * 3,
        grid=grid,
        in_specs=[pl.BlockSpec((1, C, TH, Wov), lambda p, h: (p, 0, h, 0)),
                  pl.BlockSpec((1, C, TH, Wov), lambda p, h: (p, 0, h, 0)),
                  pl.BlockSpec((1, TH, Wov), lambda p, h: (p, h, 0))],
        out_specs=(acc_spec,) * 3,
        compiler_params=pltpu.CompilerParams(
            dimension_semantics=("parallel", "arbitrary"),
            vmem_limit_bytes=vmem_limit),
    )(a_b, b_b, w_b)
    return tuple(jnp.sum(o) for o in outs)


# --------------------------------------------------------------------------
# Full ssp_loss.forward
# --------------------------------------------------------------------------
def ssp_loss_forward(outputs, overlap, flips, labels, ignore_index=IGNORE_INDEX):
    overlap = np.asarray(overlap)
    flips = np.asarray(flips)
    N, C, H, W = outputs.shape
    len_img = N // 2
    vmem_limit = _vmem_limit_bytes()

    labels = labels.astype(jnp.int32)

    # ---- ex_labels: one vectorized masked update (host-built numpy mask) ----
    bounds = []
    ign_mask = np.zeros((N, H, W), dtype=bool)
    for i in range(len_img):
        (y0a, x0a), (y1a, x1a) = [(int(p[0]), int(p[1])) for p in overlap[i][0]]
        (y0b, x0b), (y1b, x1b) = [(int(p[0]), int(p[1])) for p in overlap[i][1]]
        bounds.append(((y0a, x0a, y1a, x1a), (y0b, x0b, y1b, x1b)))
        ign_mask[2 * i, y0a:y1a, x0a:x1a] = True
        ign_mask[2 * i + 1, y0b:y1b, x0b:x1b] = True
    ex_labels = jnp.where(jnp.asarray(ign_mask), jnp.int32(ignore_index), labels)

    # ---- pair buffers shrunk to the overlap footprint (static host bounds) ----
    sizes = []
    for (ba, bb) in bounds:
        h1, w1 = ba[2] - ba[0], ba[3] - ba[1]
        h2, w2 = bb[2] - bb[0], bb[3] - bb[1]
        sizes.append((h1, w1, h2, w2,
                      h1 >= 1 and w1 >= 1 and h2 >= 1 and w2 >= 1))
    Hov = _round_up(max([max(s[0], s[2]) for s in sizes if s[4]] + [1]), 8)
    Wov = max([max(s[1], s[3]) for s in sizes if s[4]] + [1])

    a_pads, b_pads, w_pads = [], [], []
    for i, ((ba, bb), (h1, w1, h2, w2, valid)) in enumerate(zip(bounds, sizes)):
        w_pad = np.zeros((Hov, Wov), np.float32)
        if valid:
            img_1 = outputs[2 * i, :, ba[0]:ba[2], ba[1]:ba[3]]
            img_2 = outputs[2 * i + 1, :, bb[0]:bb[2], bb[1]:bb[3]]
            if flips[i] == -1:
                # W-flip fuses with the (already required) padding copy
                img_2 = jnp.flip(img_2, axis=2)
            # shape_1 == shape_2 assumed, as required by the PyTorch module's MSE
            a_pad = jnp.pad(img_1, ((0, 0), (0, Hov - h1), (0, Wov - w1)))
            b_pad = jnp.pad(img_2, ((0, 0), (0, Hov - h2), (0, Wov - w2)))
            w_pad[:h1, :w1] = 1.0 / float(h1 * w1)
        else:
            # degenerate overlap contributes 0 (weights stay zero)
            a_pad = jnp.zeros((C, Hov, Wov), outputs.dtype)
            b_pad = jnp.zeros((C, Hov, Wov), outputs.dtype)
        a_pads.append(a_pad)
        b_pads.append(b_pad)
        w_pads.append(w_pad)

    a_b = jnp.stack(a_pads)
    b_b = jnp.stack(b_pads)
    w_b = jnp.asarray(np.stack(w_pads))

    mse_sum, ce12_sum, ce21_sum = _pair_losses_batched(a_b, b_b, w_b, vmem_limit)
    mse = mse_sum / len_img
    ce_1_2 = ce12_sum / len_img
    ce_2_1 = ce21_sum / len_img
    sym_ce = 0.5 * (ce_1_2 + ce_2_1)

    # ---- full-image CE + exclusive CE (one fused sweep over the logits) ----
    # Logits stay in their native dtype (bf16-friendly) through HBM/DMA.
    Hp = _round_up(H, 8)
    if Hp != H:
        outputs_ce = jnp.pad(outputs, ((0, 0), (0, 0), (0, Hp - H), (0, 0)))
        labels_ce = jnp.pad(labels, ((0, 0), (0, Hp - H), (0, 0)),
                            constant_values=ignore_index)
        ex_labels_ce = jnp.pad(ex_labels, ((0, 0), (0, Hp - H), (0, 0)),
                               constant_values=ignore_index)
    else:
        outputs_ce, labels_ce, ex_labels_ce = outputs, labels, ex_labels
    ce, ex_ce = _fused_ce(outputs_ce, labels_ce, ex_labels_ce, ignore_index,
                          vmem_limit)

    return mse, ce_1_2, ce_2_1, sym_ce, ce, ex_ce


if __name__ == "__main__":
    key = jax.random.PRNGKey(0)
    N, C, H, W = 4, 4, 16, 16          # 2 image pairs, 4 classes, 16x16 maps
    k1, k2 = jax.random.split(key)

    outputs = jax.random.normal(k1, (N, C, H, W), dtype=jnp.float32)
    labels = jax.random.randint(k2, (N, H, W), 0, C, dtype=jnp.int32)
    # a few naturally-ignored pixels to exercise ignore_index in the full CE
    labels = labels.at[0, 0, 0:4].set(IGNORE_INDEX)

    overlap = np.array(
        [
            [[[2, 3], [10, 13]], [[4, 0], [12, 10]]],   # pair 0: 8x10 overlap
            [[[0, 0], [8, 8]],   [[8, 8], [16, 16]]],   # pair 1: 8x8 overlap (flipped)
        ],
        dtype=np.int32,
    )
    flips = np.array([1, -1], dtype=np.int32)

    result = ssp_loss_forward(outputs, overlap, flips, labels)
    result = jax.block_until_ready(result)
    print("KERNEL_OK")
</pallas_src>

<mosaic_0001>
module attributes {stable_mosaic.version = 11 : i64} {
  func.func @_pair_kernel(%arg0: i32, %arg1: i32, %arg2: memref<1x4x8x10xf32, #tpu.memory_space<vmem>>, %arg3: memref<1x4x8x10xf32, #tpu.memory_space<vmem>>, %arg4: memref<1x8x10xf32, #tpu.memory_space<vmem>>, %arg5: memref<1x8x10xf32, #tpu.memory_space<vmem>>, %arg6: memref<1x8x10xf32, #tpu.memory_space<vmem>>, %arg7: memref<1x8x10xf32, #tpu.memory_space<vmem>>) attributes {dimension_semantics = [#tpu.dimension_semantics<parallel>, #tpu.dimension_semantics<arbitrary>], iteration_bounds = array<i64: 2, 1>, scalar_prefetch = 0 : i64, scratch_operands = 0 : i64, tpu.core_type = #tpu.core_type<tc>, window_params = [{transform_indices = @transform_0, window_bounds = array<i64: 1, 4, 8, 10>}, {transform_indices = @transform_1, window_bounds = array<i64: 1, 4, 8, 10>}, {transform_indices = @transform_2, window_bounds = array<i64: 1, 8, 10>}, {transform_indices = @transform_3, window_bounds = array<i64: 1, 8, 10>}, {transform_indices = @transform_4, window_bounds = array<i64: 1, 8, 10>}, {transform_indices = @transform_5, window_bounds = array<i64: 1, 8, 10>}]} {
    %c0_i32 = arith.constant 0 : i32
    %0 = arith.cmpi eq, %arg1, %c0_i32 : i32
    %1 = arith.extui %0 : i1 to i32
    %c0_i32_0 = arith.constant 0 : i32
    %2 = arith.cmpi ne, %1, %c0_i32_0 : i32
    scf.if %2 {
      %cst_87 = arith.constant 0.000000e+00 : f32
      %121 = vector.broadcast %cst_87 : f32 to vector<1x8x10xf32>
      %c0_88 = arith.constant 0 : index
      %c0_89 = arith.constant 0 : index
      %c0_90 = arith.constant 0 : index
      %122 = vector.load %arg5[%c0_88, %c0_89, %c0_90] : memref<1x8x10xf32, #tpu.memory_space<vmem>>, vector<1x8x10xf32>
      tpu.vector_store %arg5[%c0_88, %c0_89, %c0_90], %121 {strides = array<i32>} : memref<1x8x10xf32, #tpu.memory_space<vmem>>, vector<1x8x10xf32>,
      %cst_91 = arith.constant 0.000000e+00 : f32
      %123 = vector.broadcast %cst_91 : f32 to vector<1x8x10xf32>
      %c0_92 = arith.constant 0 : index
      %c0_93 = arith.constant 0 : index
      %c0_94 = arith.constant 0 : index
      %124 = vector.load %arg6[%c0_92, %c0_93, %c0_94] : memref<1x8x10xf32, #tpu.memory_space<vmem>>, vector<1x8x10xf32>
      tpu.vector_store %arg6[%c0_92, %c0_93, %c0_94], %123 {strides = array<i32>} : memref<1x8x10xf32, #tpu.memory_space<vmem>>, vector<1x8x10xf32>,
      %cst_95 = arith.constant 0.000000e+00 : f32
      %125 = vector.broadcast %cst_95 : f32 to vector<1x8x10xf32>
      %c0_96 = arith.constant 0 : index
      %c0_97 = arith.constant 0 : index
      %c0_98 = arith.constant 0 : index
      %126 = vector.load %arg7[%c0_96, %c0_97, %c0_98] : memref<1x8x10xf32, #tpu.memory_space<vmem>>, vector<1x8x10xf32>
      tpu.vector_store %arg7[%c0_96, %c0_97, %c0_98], %125 {strides = array<i32>} : memref<1x8x10xf32, #tpu.memory_space<vmem>>, vector<1x8x10xf32>,
    } else {
    }
    %c0 = arith.constant 0 : index
    %c0_1 = arith.constant 0 : index
    %c0_2 = arith.constant 0 : index
    %3 = vector.load %arg4[%c0, %c0_1, %c0_2] : memref<1x8x10xf32, #tpu.memory_space<vmem>>, vector<1x8x10xf32>
    %4 = vector.shape_cast %3 : vector<1x8x10xf32> to vector<8x10xf32>
    %c0_3 = arith.constant 0 : index
    %c0_4 = arith.constant 0 : index
    %c0_5 = arith.constant 0 : index
    %c0_6 = arith.constant 0 : index
    %5 = vector.load %arg2[%c0_3, %c0_4, %c0_5, %c0_6] : memref<1x4x8x10xf32, #tpu.memory_space<vmem>>, vector<1x1x8x10xf32>
    %6 = vector.shape_cast %5 : vector<1x1x8x10xf32> to vector<8x10xf32>
    %c0_7 = arith.constant 0 : index
    %c0_8 = arith.constant 0 : index
    %c0_9 = arith.constant 0 : index
    %c0_10 = arith.constant 0 : index
    %7 = vector.load %arg3[%c0_7, %c0_8, %c0_9, %c0_10] : memref<1x4x8x10xf32, #tpu.memory_space<vmem>>, vector<1x1x8x10xf32>
    %8 = vector.shape_cast %7 : vector<1x1x8x10xf32> to vector<8x10xf32>
    %9 = arith.subf %6, %8 : vector<8x10xf32>
    %10 = arith.mulf %9, %9 : vector<8x10xf32>
    %c0_11 = arith.constant 0 : index
    %c1 = arith.constant 1 : index
    %c0_12 = arith.constant 0 : index
    %c0_13 = arith.constant 0 : index
    %11 = vector.load %arg2[%c0_11, %c1, %c0_12, %c0_13] : memref<1x4x8x10xf32, #tpu.memory_space<vmem>>, vector<1x1x8x10xf32>
    %12 = vector.shape_cast %11 : vector<1x1x8x10xf32> to vector<8x10xf32>
    %c0_14 = arith.constant 0 : index
    %c1_15 = arith.constant 1 : index
    %c0_16 = arith.constant 0 : index
    %c0_17 = arith.constant 0 : index
    %13 = vector.load %arg3[%c0_14, %c1_15, %c0_16, %c0_17] : memref<1x4x8x10xf32, #tpu.memory_space<vmem>>, vector<1x1x8x10xf32>
    %14 = vector.shape_cast %13 : vector<1x1x8x10xf32> to vector<8x10xf32>
    %15 = arith.subf %12, %14 : vector<8x10xf32>
    %16 = arith.mulf %15, %15 : vector<8x10xf32>
    %17 = arith.addf %10, %16 : vector<8x10xf32>
    %18 = arith.cmpf ogt, %12, %6 : vector<8x10xf32>
    %19 = arith.cmpf ogt, %14, %8 : vector<8x10xf32>
    %20 = arith.select %19, %12, %6 : vector<8x10xi1>, vector<8x10xf32>
    %21 = arith.select %18, %14, %8 : vector<8x10xi1>, vector<8x10xf32>
    %22 = arith.select %18, %12, %6 : vector<8x10xi1>, vector<8x10xf32>
    %23 = arith.select %19, %14, %8 : vector<8x10xi1>, vector<8x10xf32>
    %c0_18 = arith.constant 0 : index
    %c2 = arith.constant 2 : index
    %c0_19 = arith.constant 0 : index
    %c0_20 = arith.constant 0 : index
    %24 = vector.load %arg2[%c0_18, %c2, %c0_19, %c0_20] : memref<1x4x8x10xf32, #tpu.memory_space<vmem>>, vector<1x1x8x10xf32>
    %25 = vector.shape_cast %24 : vector<1x1x8x10xf32> to vector<8x10xf32>
    %c0_21 = arith.constant 0 : index
    %c2_22 = arith.constant 2 : index
    %c0_23 = arith.constant 0 : index
    %c0_24 = arith.constant 0 : index
    %26 = vector.load %arg3[%c0_21, %c2_22, %c0_23, %c0_24] : memref<1x4x8x10xf32, #tpu.memory_space<vmem>>, vector<1x1x8x10xf32>
    %27 = vector.shape_cast %26 : vector<1x1x8x10xf32> to vector<8x10xf32>
    %28 = arith.subf %25, %27 : vector<8x10xf32>
    %29 = arith.mulf %28, %28 : vector<8x10xf32>
    %30 = arith.addf %17, %29 : vector<8x10xf32>
    %31 = arith.cmpf ogt, %25, %22 : vector<8x10xf32>
    %32 = arith.cmpf ogt, %27, %23 : vector<8x10xf32>
    %33 = arith.select %32, %25, %20 : vector<8x10xi1>, vector<8x10xf32>
    %34 = arith.select %31, %27, %21 : vector<8x10xi1>, vector<8x10xf32>
    %35 = arith.select %31, %25, %22 : vector<8x10xi1>, vector<8x10xf32>
    %36 = arith.select %32, %27, %23 : vector<8x10xi1>, vector<8x10xf32>
    %c0_25 = arith.constant 0 : index
    %c3 = arith.constant 3 : index
    %c0_26 = arith.constant 0 : index
    %c0_27 = arith.constant 0 : index
    %37 = vector.load %arg2[%c0_25, %c3, %c0_26, %c0_27] : memref<1x4x8x10xf32, #tpu.memory_space<vmem>>, vector<1x1x8x10xf32>
    %38 = vector.shape_cast %37 : vector<1x1x8x10xf32> to vector<8x10xf32>
    %c0_28 = arith.constant 0 : index
    %c3_29 = arith.constant 3 : index
    %c0_30 = arith.constant 0 : index
    %c0_31 = arith.constant 0 : index
    %39 = vector.load %arg3[%c0_28, %c3_29, %c0_30, %c0_31] : memref<1x4x8x10xf32, #tpu.memory_space<vmem>>, vector<1x1x8x10xf32>
    %40 = vector.shape_cast %39 : vector<1x1x8x10xf32> to vector<8x10xf32>
    %41 = arith.subf %38, %40 : vector<8x10xf32>
    %42 = arith.mulf %41, %41 : vector<8x10xf32>
    %43 = arith.addf %30, %42 : vector<8x10xf32>
    %44 = arith.cmpf ogt, %38, %35 : vector<8x10xf32>
    %45 = arith.cmpf ogt, %40, %36 : vector<8x10xf32>
    %46 = arith.select %45, %38, %33 : vector<8x10xi1>, vector<8x10xf32>
    %47 = arith.select %44, %40, %34 : vector<8x10xi1>, vector<8x10xf32>
    %48 = arith.select %44, %38, %35 : vector<8x10xi1>, vector<8x10xf32>
    %49 = arith.select %45, %40, %36 : vector<8x10xi1>, vector<8x10xf32>
    %cst = arith.constant 0.000000e+00 : f32
    %50 = vector.broadcast %cst : f32 to vector<8x10xf32>
    %cst_32 = arith.constant 0.000000e+00 : f32
    %51 = vector.broadcast %cst_32 : f32 to vector<8x10xf32>
    %c0_33 = arith.constant 0 : index
    %c0_34 = arith.constant 0 : index
    %c0_35 = arith.constant 0 : index
    %c0_36 = arith.constant 0 : index
    %52 = vector.load %arg2[%c0_33, %c0_34, %c0_35, %c0_36] : memref<1x4x8x10xf32, #tpu.memory_space<vmem>>, vector<1x1x8x10xf32>
    %53 = vector.shape_cast %52 : vector<1x1x8x10xf32> to vector<8x10xf32>
    %54 = arith.subf %53, %48 : vector<8x10xf32>
    %55 = math.exp %54 : vector<8x10xf32>
    %56 = arith.addf %50, %55 : vector<8x10xf32>
    %c0_37 = arith.constant 0 : index
    %c0_38 = arith.constant 0 : index
    %c0_39 = arith.constant 0 : index
    %c0_40 = arith.constant 0 : index
    %57 = vector.load %arg3[%c0_37, %c0_38, %c0_39, %c0_40] : memref<1x4x8x10xf32, #tpu.memory_space<vmem>>, vector<1x1x8x10xf32>
    %58 = vector.shape_cast %57 : vector<1x1x8x10xf32> to vector<8x10xf32>
    %59 = arith.subf %58, %49 : vector<8x10xf32>
    %60 = math.exp %59 : vector<8x10xf32>
    %61 = arith.addf %51, %60 : vector<8x10xf32>
    %c0_41 = arith.constant 0 : index
    %c1_42 = arith.constant 1 : index
    %c0_43 = arith.constant 0 : index
    %c0_44 = arith.constant 0 : index
    %62 = vector.load %arg2[%c0_41, %c1_42, %c0_43, %c0_44] : memref<1x4x8x10xf32, #tpu.memory_space<vmem>>, vector<1x1x8x10xf32>
    %63 = vector.shape_cast %62 : vector<1x1x8x10xf32> to vector<8x10xf32>
    %64 = arith.subf %63, %48 : vector<8x10xf32>
    %65 = math.exp %64 : vector<8x10xf32>
    %66 = arith.addf %56, %65 : vector<8x10xf32>
    %c0_45 = arith.constant 0 : index
    %c1_46 = arith.constant 1 : index
    %c0_47 = arith.constant 0 : index
    %c0_48 = arith.constant 0 : index
    %67 = vector.load %arg3[%c0_45, %c1_46, %c0_47, %c0_48] : memref<1x4x8x10xf32, #tpu.memory_space<vmem>>, vector<1x1x8x10xf32>
    %68 = vector.shape_cast %67 : vector<1x1x8x10xf32> to vector<8x10xf32>
    %69 = arith.subf %68, %49 : vector<8x10xf32>
    %70 = math.exp %69 : vector<8x10xf32>
    %71 = arith.addf %61, %70 : vector<8x10xf32>
    %c0_49 = arith.constant 0 : index
    %c2_50 = arith.constant 2 : index
    %c0_51 = arith.constant 0 : index
    %c0_52 = arith.constant 0 : index
    %72 = vector.load %arg2[%c0_49, %c2_50, %c0_51, %c0_52] : memref<1x4x8x10xf32, #tpu.memory_space<vmem>>, vector<1x1x8x10xf32>
    %73 = vector.shape_cast %72 : vector<1x1x8x10xf32> to vector<8x10xf32>
    %74 = arith.subf %73, %48 : vector<8x10xf32>
    %75 = math.exp %74 : vector<8x10xf32>
    %76 = arith.addf %66, %75 : vector<8x10xf32>
    %c0_53 = arith.constant 0 : index
    %c2_54 = arith.constant 2 : index
    %c0_55 = arith.constant 0 : index
    %c0_56 = arith.constant 0 : index
    %77 = vector.load %arg3[%c0_53, %c2_54, %c0_55, %c0_56] : memref<1x4x8x10xf32, #tpu.memory_space<vmem>>, vector<1x1x8x10xf32>
    %78 = vector.shape_cast %77 : vector<1x1x8x10xf32> to vector<8x10xf32>
    %79 = arith.subf %78, %49 : vector<8x10xf32>
    %80 = math.exp %79 : vector<8x10xf32>
    %81 = arith.addf %71, %80 : vector<8x10xf32>
    %c0_57 = arith.constant 0 : index
    %c3_58 = arith.constant 3 : index
    %c0_59 = arith.constant 0 : index
    %c0_60 = arith.constant 0 : index
    %82 = vector.load %arg2[%c0_57, %c3_58, %c0_59, %c0_60] : memref<1x4x8x10xf32, #tpu.memory_space<vmem>>, vector<1x1x8x10xf32>
    %83 = vector.shape_cast %82 : vector<1x1x8x10xf32> to vector<8x10xf32>
    %84 = arith.subf %83, %48 : vector<8x10xf32>
    %85 = math.exp %84 : vector<8x10xf32>
    %86 = arith.addf %76, %85 : vector<8x10xf32>
    %c0_61 = arith.constant 0 : index
    %c3_62 = arith.constant 3 : index
    %c0_63 = arith.constant 0 : index
    %c0_64 = arith.constant 0 : index
    %87 = vector.load %arg3[%c0_61, %c3_62, %c0_63, %c0_64] : memref<1x4x8x10xf32, #tpu.memory_space<vmem>>, vector<1x1x8x10xf32>
    %88 = vector.shape_cast %87 : vector<1x1x8x10xf32> to vector<8x10xf32>
    %89 = arith.subf %88, %49 : vector<8x10xf32>
    %90 = math.exp %89 : vector<8x10xf32>
    %91 = arith.addf %81, %90 : vector<8x10xf32>
    %92 = math.log %86 : vector<8x10xf32>
    %93 = arith.addf %48, %92 : vector<8x10xf32>
    %94 = math.log %91 : vector<8x10xf32>
    %95 = arith.addf %49, %94 : vector<8x10xf32>
    %c0_65 = arith.constant 0 : index
    %c0_66 = arith.constant 0 : index
    %c0_67 = arith.constant 0 : index
    %96 = vector.load %arg5[%c0_65, %c0_66, %c0_67] : memref<1x8x10xf32, #tpu.memory_space<vmem>>, vector<1x8x10xf32>
    %97 = arith.mulf %43, %4 : vector<8x10xf32>
    %98 = vector.shape_cast %97 : vector<8x10xf32> to vector<1x8x10xf32>
    %cst_68 = arith.constant dense<0.000000e+00> : vector<8x10xf32>
    %99 = vector.multi_reduction <add>, %98, %cst_68 [0] : vector<1x8x10xf32> to vector<8x10xf32>
    %cst_69 = arith.constant 2.500000e-01 : f32
    %100 = vector.broadcast %cst_69 : f32 to vector<8x10xf32>
    %101 = arith.mulf %99, %100 : vector<8x10xf32>
    %102 = vector.shape_cast %101 : vector<8x10xf32> to vector<1x8x10xf32>
    %103 = arith.addf %96, %102 : vector<1x8x10xf32>
    %c0_70 = arith.constant 0 : index
    %c0_71 = arith.constant 0 : index
    %c0_72 = arith.constant 0 : index
    %104 = vector.load %arg5[%c0_70, %c0_71, %c0_72] : memref<1x8x10xf32, #tpu.memory_space<vmem>>, vector<1x8x10xf32>
    tpu.vector_store %arg5[%c0_70, %c0_71, %c0_72], %103 {strides = array<i32>} : memref<1x8x10xf32, #tpu.memory_space<vmem>>, vector<1x8x10xf32>,
    %c0_73 = arith.constant 0 : index
    %c0_74 = arith.constant 0 : index
    %c0_75 = arith.constant 0 : index
    %105 = vector.load %arg6[%c0_73, %c0_74, %c0_75] : memref<1x8x10xf32, #tpu.memory_space<vmem>>, vector<1x8x10xf32>
    %106 = arith.subf %93, %46 : vector<8x10xf32>
    %107 = arith.mulf %106, %4 : vector<8x10xf32>
    %108 = vector.shape_cast %107 : vector<8x10xf32> to vector<1x8x10xf32>
    %cst_76 = arith.constant dense<0.000000e+00> : vector<8x10xf32>
    %109 = vector.multi_reduction <add>, %108, %cst_76 [0] : vector<1x8x10xf32> to vector<8x10xf32>
    %110 = vector.shape_cast %109 : vector<8x10xf32> to vector<1x8x10xf32>
    %111 = arith.addf %105, %110 : vector<1x8x10xf32>
    %c0_77 = arith.constant 0 : index
    %c0_78 = arith.constant 0 : index
    %c0_79 = arith.constant 0 : index
    %112 = vector.load %arg6[%c0_77, %c0_78, %c0_79] : memref<1x8x10xf32, #tpu.memory_space<vmem>>, vector<1x8x10xf32>
    tpu.vector_store %arg6[%c0_77, %c0_78, %c0_79], %111 {strides = array<i32>} : memref<1x8x10xf32, #tpu.memory_space<vmem>>, vector<1x8x10xf32>,
    %c0_80 = arith.constant 0 : index
    %c0_81 = arith.constant 0 : index
    %c0_82 = arith.constant 0 : index
    %113 = vector.load %arg7[%c0_80, %c0_81, %c0_82] : memref<1x8x10xf32, #tpu.memory_space<vmem>>, vector<1x8x10xf32>
    %114 = arith.subf %95, %47 : vector<8x10xf32>
    %115 = arith.mulf %114, %4 : vector<8x10xf32>
    %116 = vector.shape_cast %115 : vector<8x10xf32> to vector<1x8x10xf32>
    %cst_83 = arith.constant dense<0.000000e+00> : vector<8x10xf32>
    %117 = vector.multi_reduction <add>, %116, %cst_83 [0] : vector<1x8x10xf32> to vector<8x10xf32>
    %118 = vector.shape_cast %117 : vector<8x10xf32> to vector<1x8x10xf32>
    %119 = arith.addf %113, %118 : vector<1x8x10xf32>
    %c0_84 = arith.constant 0 : index
    %c0_85 = arith.constant 0 : index
    %c0_86 = arith.constant 0 : index
    %120 = vector.load %arg7[%c0_84, %c0_85, %c0_86] : memref<1x8x10xf32, #tpu.memory_space<vmem>>, vector<1x8x10xf32>
    tpu.vector_store %arg7[%c0_84, %c0_85, %c0_86], %119 {strides = array<i32>} : memref<1x8x10xf32, #tpu.memory_space<vmem>>, vector<1x8x10xf32>,
    return
  }
  func.func @transform_0(%arg0: i32, %arg1: i32) -> (i32, i32, i32, i32) {
    %c0_i32 = arith.constant 0 : i32
    %c0_i32_0 = arith.constant 0 : i32
    %c0_i32_1 = arith.constant 0 : i32
    return %arg0, %c0_i32, %arg1, %c0_i32_0 : i32, i32, i32, i32
  }
  func.func @transform_1(%arg0: i32, %arg1: i32) -> (i32, i32, i32, i32) {
    %c0_i32 = arith.constant 0 : i32
    %c0_i32_0 = arith.constant 0 : i32
    %c0_i32_1 = arith.constant 0 : i32
    return %arg0, %c0_i32, %arg1, %c0_i32_0 : i32, i32, i32, i32
  }
  func.func @transform_2(%arg0: i32, %arg1: i32) -> (i32, i32, i32) {
    %c0_i32 = arith.constant 0 : i32
    %c0_i32_0 = arith.constant 0 : i32
    return %arg0, %arg1, %c0_i32 : i32, i32, i32
  }
  func.func @transform_3(%arg0: i32, %arg1: i32) -> (i32, i32, i32) {
    %c0_i32 = arith.constant 0 : i32
    %c0_i32_0 = arith.constant 0 : i32
    %c0_i32_1 = arith.constant 0 : i32
    return %arg0, %c0_i32, %c0_i32_0 : i32, i32, i32
  }
  func.func @transform_4(%arg0: i32, %arg1: i32) -> (i32, i32, i32) {
    %c0_i32 = arith.constant 0 : i32
    %c0_i32_0 = arith.constant 0 : i32
    %c0_i32_1 = arith.constant 0 : i32
    return %arg0, %c0_i32, %c0_i32_0 : i32, i32, i32
  }
  func.func @transform_5(%arg0: i32, %arg1: i32) -> (i32, i32, i32) {
    %c0_i32 = arith.constant 0 : i32
    %c0_i32_0 = arith.constant 0 : i32
    %c0_i32_1 = arith.constant 0 : i32
    return %arg0, %c0_i32, %c0_i32_0 : i32, i32, i32
  }
}

</mosaic_0001>

<llo_original>
// kernel: tpu_custom_call.1
$region0: #{tpu_custom_call.1}
  #allocation0 [shape = 'u32[]', space=smem, size = 0x4, offset = 0x4, fixed_abs, tag = 'smem constant byte address 0x4 - core index']
  #allocation1 [shape = 'u32[144,128]{1,0:T(1,128)}', space=vmem, size = 0x12000, scoped, tag = 'internal scratch']
  %s0 = inlined_call_operand.hbm [shape: f32[2,4,8,10], index: 0, kind: input, shape index: {}]
  %s1 = inlined_call_operand.hbm [shape: f32[2,4,8,10], index: 1, kind: input, shape index: {}]
  %s2 = inlined_call_operand.hbm [shape: f32[2,8,10], index: 2, kind: input, shape index: {}]
  %s3 = inlined_call_operand.hbm [shape: f32[2,8,10], index: 3, kind: output, shape index: {0}]
  %s4 = inlined_call_operand.hbm [shape: f32[2,8,10], index: 4, kind: output, shape index: {1}]
  %s5 = inlined_call_operand.hbm [shape: f32[2,8,10], index: 5, kind: output, shape index: {2}]
  %6 = xla_tuple %s3, %s4, %s5
  %s7 = sld [smem:[#allocation0]]
  $region77: #{tpu_custom_call.1} parent=0
    _
  %s9 = ssub.s32 1, %s7
  %s10 = scalar_select 0, %s9, %s7
  $region1: #{tpu_custom_call.1} parent=0
    #allocation2 [shape = 'u8[32768]{0}', space=vmem, size = 0x8000, scoped, tag = 'input window, operand 0']
    #allocation3 [shape = 's32[2]{0}', space=sflag, size = 0x8, scoped, tag = 'scoped memory for tpu_custom_call.1']
    #allocation4 [shape = 's32[2]{0}', space=sflag, size = 0x8, scoped, tag = 'scoped memory for tpu_custom_call.1']
    #allocation5 [shape = 'u8[32768]{0}', space=vmem, size = 0x8000, scoped, tag = 'input window, operand 1']
    #allocation6 [shape = 's32[2]{0}', space=sflag, size = 0x8, scoped, tag = 'scoped memory for tpu_custom_call.1']
    #allocation7 [shape = 'u8[8192]{0}', space=vmem, size = 0x2000, scoped, tag = 'input window, operand 2']
    #allocation8 [shape = 'u8[8192]{0}', space=vmem, size = 0x2000, scoped, tag = 'output window, operand 0']
    #allocation9 [shape = 'u8[8192]{0}', space=vmem, size = 0x2000, scoped, tag = 'output window, operand 1']
    #allocation10 [shape = 's32[2]{0}', space=sflag, size = 0x8, scoped, tag = 'scoped memory for tpu_custom_call.1']
    #allocation11 [shape = 'u8[8192]{0}', space=vmem, size = 0x2000, scoped, tag = 'output window, operand 2']
    %11 = vsyncpa [#allocation3], 0
    %s12 = scalar_lea.sflag [#allocation3], 1
    %13 = vsyncpa %s12, 0
    %14 = vsyncpa [#allocation6], 0
    %s15 = scalar_lea.sflag [#allocation6], 1
    %16 = vsyncpa %s15, 0
    %17 = vsyncpa [#allocation4], 0
    %s18 = scalar_lea.sflag [#allocation4], 1
    %19 = vsyncpa %s18, 0
    %20 = vsyncpa [#allocation10], 0
    %s21 = scalar_lea.sflag [#allocation10], 1
    %22 = vsyncpa %s21, 0
    loop: start=0, step=1, limit=4
    $region2: #{tpu_custom_call.1} parent=1 // loop_pre_header
      _
    $region3: #{tpu_custom_call.1} parent=1 // loop_header
      %s24 = sphi 0, %s28
      %p25 = scmp.ge.s32.totalorder %s24, 4
      %s31 = sphi 0, %s43
      %s32 = sphi 0, %s39
      %s33 = sphi 0, %s31
      %s34 = sphi 0, %s32
      %s35 = sphi 0, %s33
      %s36 = sphi 0, %s34
      %s48 = sphi 0, %s50
      %s51 = sphi 0, %s48
      %s52 = sphi 0, %s51
      %s68 = sphi 0, %s52
      %s76 = sphi 0, %s78
      %s79 = sphi 0, %s76
      %s80 = sphi 0, %s79
      %s96 = sphi 0, %s80
      %s104 = sphi 0, %s106
      %s107 = sphi 0, %s104
      %s108 = sphi 0, %s107
      %s124 = sphi 0, %s108
      %s130 = sphi 0, %s132
      %s133 = sphi 0, %s130
      %s134 = sphi 0, %s133
      %s150 = sphi 0, %s134
      %s156 = sphi 0, %s158
      %s159 = sphi 0, %s156
      %s160 = sphi 0, %s159
      %s176 = sphi 0, %s160
      %s182 = sphi 0, %s184
      %s185 = sphi 0, %s182
      %s186 = sphi 0, %s185
      %s202 = sphi 0, %s186
    $region4: #{tpu_custom_call.1} parent=1 // loop_header_branch
      %27 = sbr.rel (%p25) target = $region8
    $region5: #{tpu_custom_call.1} parent=1 // loop_body
      %s29 = ssub.s32 %s24, 1
      %s30 = ssub.s32 %s24, 2
      %s37 = sadd.s32 1, %s32
      %p38 = scmp.ge.s32.totalorder %s37, 1
      %s39 = scalar_select %p38, 0, %s37
      %s40 = sadd.s32 1, %s31
      %s41 = scalar_select %p38, %s40, %s31
      %p42 = scmp.ge.s32.totalorder %s41, 2
      %s43 = scalar_select %p42, 0, %s41
      %s44 = ssub.s32 %s31, %s43
      %s45 = ssub.s32 %s32, %s39
      %s46 = sor.u32 %s44, %s45
      %p47 = scmp.eq.s32.totalorder %s46, 0
      %s49 = sadd.s32 %s48, 1
      %s50 = scalar_select %p47, %s48, %s49
      %p53 = pneg %p47
      %p54 = scmp.eq.s32.totalorder %s24, 1
      %p55 = por %p53, %p54
      %p56 = scmp.ne.s32.totalorder %s48, %s51
      %p57 = scmp.eq.s32.totalorder %s24, 0
      %p58 = por %p56, %p57
      %p59 = scmp.ne.s32.totalorder %s48, %s51
      %p60 = scmp.eq.s32.totalorder %s29, 1
      %p61 = por %p59, %p60
      %p62 = scmp.ne.s32.totalorder %s51, %s52
      %p63 = scmp.eq.s32.totalorder %s29, 0
      %p64 = por %p62, %p63
      %p65 = scmp.ne.s32.totalorder %s51, %s52
      %p66 = scmp.eq.s32.totalorder %s30, 1
      %p67 = por %p65, %p66
      %p69 = scmp.ne.s32.totalorder %s52, %s68
      %p70 = scmp.eq.s32.totalorder %s30, 0
      %p71 = por %p69, %p70
      %s72 = ssub.s32 %s31, %s43
      %s73 = ssub.s32 %s32, %s39
      %s74 = sor.u32 %s72, %s73
      %p75 = scmp.eq.s32.totalorder %s74, 0
      %s77 = sadd.s32 %s76, 1
      %s78 = scalar_select %p75, %s76, %s77
      %p81 = pneg %p75
      %p82 = scmp.eq.s32.totalorder %s24, 1
      %p83 = por %p81, %p82
      %p84 = scmp.ne.s32.totalorder %s76, %s79
      %p85 = scmp.eq.s32.totalorder %s24, 0
      %p86 = por %p84, %p85
      %p87 = scmp.ne.s32.totalorder %s76, %s79
      %p88 = scmp.eq.s32.totalorder %s29, 1
      %p89 = por %p87, %p88
      %p90 = scmp.ne.s32.totalorder %s79, %s80
      %p91 = scmp.eq.s32.totalorder %s29, 0
      %p92 = por %p90, %p91
      %p93 = scmp.ne.s32.totalorder %s79, %s80
      %p94 = scmp.eq.s32.totalorder %s30, 1
      %p95 = por %p93, %p94
      %p97 = scmp.ne.s32.totalorder %s80, %s96
      %p98 = scmp.eq.s32.totalorder %s30, 0
      %p99 = por %p97, %p98
      %s100 = ssub.s32 %s31, %s43
      %s101 = ssub.s32 %s32, %s39
      %s102 = sor.u32 %s100, %s101
      %p103 = scmp.eq.s32.totalorder %s102, 0
      %s105 = sadd.s32 %s104, 1
      %s106 = scalar_select %p103, %s104, %s105
      %p109 = pneg %p103
      %p110 = scmp.eq.s32.totalorder %s24, 1
      %p111 = por %p109, %p110
      %p112 = scmp.ne.s32.totalorder %s104, %s107
      %p113 = scmp.eq.s32.totalorder %s24, 0
      %p114 = por %p112, %p113
      %p115 = scmp.ne.s32.totalorder %s104, %s107
      %p116 = scmp.eq.s32.totalorder %s29, 1
      %p117 = por %p115, %p116
      %p118 = scmp.ne.s32.totalorder %s107, %s108
      %p119 = scmp.eq.s32.totalorder %s29, 0
      %p120 = por %p118, %p119
      %p121 = scmp.ne.s32.totalorder %s107, %s108
      %p122 = scmp.eq.s32.totalorder %s30, 1
      %p123 = por %p121, %p122
      %p125 = scmp.ne.s32.totalorder %s108, %s124
      %p126 = scmp.eq.s32.totalorder %s30, 0
      %p127 = por %p125, %p126
      %s128 = ssub.s32 %s31, %s43
      %p129 = scmp.eq.s32.totalorder %s128, 0
      %s131 = sadd.s32 %s130, 1
      %s132 = scalar_select %p129, %s130, %s131
      %p135 = pneg %p129
      %p136 = scmp.eq.s32.totalorder %s24, 1
      %p137 = por %p135, %p136
      %p138 = scmp.ne.s32.totalorder %s130, %s133
      %p139 = scmp.eq.s32.totalorder %s24, 0
      %p140 = por %p138, %p139
      %p141 = scmp.ne.s32.totalorder %s130, %s133
      %p142 = scmp.eq.s32.totalorder %s29, 1
      %p143 = por %p141, %p142
      %p144 = scmp.ne.s32.totalorder %s133, %s134
      %p145 = scmp.eq.s32.totalorder %s29, 0
      %p146 = por %p144, %p145
      %p147 = scmp.ne.s32.totalorder %s133, %s134
      %p148 = scmp.eq.s32.totalorder %s30, 1
      %p149 = por %p147, %p148
      %p151 = scmp.ne.s32.totalorder %s134, %s150
      %p152 = scmp.eq.s32.totalorder %s30, 0
      %p153 = por %p151, %p152
      %s154 = ssub.s32 %s31, %s43
      %p155 = scmp.eq.s32.totalorder %s154, 0
      %s157 = sadd.s32 %s156, 1
      %s158 = scalar_select %p155, %s156, %s157
      %p161 = pneg %p155
      %p162 = scmp.eq.s32.totalorder %s24, 1
      %p163 = por %p161, %p162
      %p164 = scmp.ne.s32.totalorder %s156, %s159
      %p165 = scmp.eq.s32.totalorder %s24, 0
      %p166 = por %p164, %p165
      %p167 = scmp.ne.s32.totalorder %s156, %s159
      %p168 = scmp.eq.s32.totalorder %s29, 1
      %p169 = por %p167, %p168
      %p170 = scmp.ne.s32.totalorder %s159, %s160
      %p171 = scmp.eq.s32.totalorder %s29, 0
      %p172 = por %p170, %p171
      %p173 = scmp.ne.s32.totalorder %s159, %s160
      %p174 = scmp.eq.s32.totalorder %s30, 1
      %p175 = por %p173, %p174
      %p177 = scmp.ne.s32.totalorder %s160, %s176
      %p178 = scmp.eq.s32.totalorder %s30, 0
      %p179 = por %p177, %p178
      %s180 = ssub.s32 %s31, %s43
      %p181 = scmp.eq.s32.totalorder %s180, 0
      %s183 = sadd.s32 %s182, 1
      %s184 = scalar_select %p181, %s182, %s183
      %p187 = pneg %p181
      %p188 = scmp.eq.s32.totalorder %s24, 1
      %p189 = por %p187, %p188
      %p190 = scmp.ne.s32.totalorder %s182, %s185
      %p191 = scmp.eq.s32.totalorder %s24, 0
      %p192 = por %p190, %p191
      %p193 = scmp.ne.s32.totalorder %s182, %s185
      %p194 = scmp.eq.s32.totalorder %s29, 1
      %p195 = por %p193, %p194
      %p196 = scmp.ne.s32.totalorder %s185, %s186
      %p197 = scmp.eq.s32.totalorder %s29, 0
      %p198 = por %p196, %p197
      %p199 = scmp.ne.s32.totalorder %s185, %s186
      %p200 = scmp.eq.s32.totalorder %s30, 1
      %p201 = por %p199, %p200
      %p203 = scmp.ne.s32.totalorder %s186, %s202
      %p204 = scmp.eq.s32.totalorder %s30, 0
      %p205 = por %p203, %p204
      %p206 = scmp.le.s32.totalorder 1, %s24
      %p207 = scmp.lt.s32.totalorder %s24, 3
      %p208 = pnand %p206, %p207
      %p209 = pneg %p208
      // Predicated region
      $region9: #{tpu_custom_call.1} parent=5 // pred_check
        _
      $region10: #{tpu_custom_call.1} parent=5 // pred_check_branch
        %211 = sbr.rel (%p208) target = $region12
      $region11: #{tpu_custom_call.1} parent=5 // pred_region
        %s212 = ssub.s32 %s24, 1
      $region12: #{tpu_custom_call.1} parent=5 // pred_fallthru
        _
      %p213 = scmp.lt.s32.totalorder %s24, 2
      // Predicated region
      $region13: #{tpu_custom_call.1} parent=5 // pred_check
        %p214 = pneg %p213
      $region14: #{tpu_custom_call.1} parent=5 // pred_check_branch
        %216 = sbr.rel (%p214) target = $region16
      $region15: #{tpu_custom_call.1} parent=5 // pred_region
        // Predicated region
        $region17: #{tpu_custom_call.1} parent=15 // pred_check
          %p217 = pneg %p58
        $region18: #{tpu_custom_call.1} parent=15 // pred_check_branch
          %219 = sbr.rel (%p217) target = $region20
        $region19: #{tpu_custom_call.1} parent=15 // pred_region
          %s220 = sand.u32 %s48, 1
          %s221 = scalar_lea.sflag [#allocation3], %s220
          %s222 = sand.u32 %s48, 1
          %s223 = smul.addr %s222, 32
          %s224 = scalar_lea.vmem [#allocation2], %s223
          %s226 = ssub.s32 512, 512
          %227 = vsyncadd %s221, %s226
          %s228 = smul.addr %s31, 4
          %s229 = sadd.s32 %s32, %s228
          %s230 = smul.addr %s229, 128
          %s231 = scalar_lea.hbm %s0, %s230
          %s232 = sshll.u32 %s224, 4
          %s233 = int_to_ptr.vmem [resolvable:$true] %s232
          %238 = dma.hbm_to_vmem [thread:$0]  %s231, 512, %s233, %s221, 128, 128, 8
        $region20: #{tpu_custom_call.1} parent=15 // pred_fallthru
          _
        // Predicated region
        $region21: #{tpu_custom_call.1} parent=15 // pred_check
          %p239 = pneg %p86
        $region22: #{tpu_custom_call.1} parent=15 // pred_check_branch
          %241 = sbr.rel (%p239) target = $region24
        $region23: #{tpu_custom_call.1} parent=15 // pred_region
          %s242 = sand.u32 %s24, 1
          %s243 = scalar_lea.sflag [#allocation6], %s242
          %s244 = sand.u32 %s76, 1
          %s245 = smul.addr %s244, 32
          %s246 = scalar_lea.vmem [#allocation5], %s245
          %s248 = ssub.s32 512, 512
          %249 = vsyncadd %s243, %s248
          %s250 = smul.addr %s31, 4
          %s251 = sadd.s32 %s32, %s250
          %s252 = smul.addr %s251, 128
          %s253 = scalar_lea.hbm %s1, %s252
          %s254 = sshll.u32 %s246, 4
          %s255 = int_to_ptr.vmem [resolvable:$true] %s254
          %260 = dma.hbm_to_vmem [thread:$0]  %s253, 512, %s255, %s243, 128, 128, 8
        $region24: #{tpu_custom_call.1} parent=15 // pred_fallthru
          _
        // Predicated region
        $region25: #{tpu_custom_call.1} parent=15 // pred_check
          %p261 = pneg %p114
        $region26: #{tpu_custom_call.1} parent=15 // pred_check_branch
          %263 = sbr.rel (%p261) target = $region28
        $region27: #{tpu_custom_call.1} parent=15 // pred_region
          %s264 = sand.u32 %s24, 1
          %s265 = scalar_lea.sflag [#allocation6], %s264
          %s266 = sand.u32 %s104, 1
          %s267 = smul.addr %s266, 8
          %s268 = scalar_lea.vmem [#allocation7], %s267
          %s270 = ssub.s32 128, 128
          %271 = vsyncadd %s265, %s270
          %s272 = sadd.s32 %s32, %s31
          %s273 = smul.addr %s272, 128
          %s274 = scalar_lea.hbm %s2, %s273
          %s276 = sshll.u32 %s268, 4
          %s277 = int_to_ptr.vmem [resolvable:$true] %s276
          %279 = dma.hbm_to_vmem [thread:$0]  %s274, 128, %s277, %s265
        $region28: #{tpu_custom_call.1} parent=15 // pred_fallthru
          _
      $region16: #{tpu_custom_call.1} parent=5 // pred_fallthru
        _
      %p280 = scmp.le.s32.totalorder 1, %s24
      %p281 = scmp.lt.s32.totalorder %s24, 3
      %p282 = pnand %p280, %p281
      %p283 = pneg %p282
      // Predicated region
      $region29: #{tpu_custom_call.1} parent=5 // pred_check
        _
      $region30: #{tpu_custom_call.1} parent=5 // pred_check_branch
        %285 = sbr.rel (%p282) target = $region32
      $region31: #{tpu_custom_call.1} parent=5 // pred_region
        %s286 = ssub.s32 %s24, 1
        %s287 = sand.u32 %s51, 1
        %s288 = scalar_lea.sflag [#allocation3], %s287
        %s289 = sand.u32 %s51, 1
        %s290 = smul.addr %s289, 32
        %s291 = scalar_lea.vmem [#allocation2], %s290
        // Predicated region
        $region33: #{tpu_custom_call.1} parent=31 // pred_check
          %p292 = pneg %p64
        $region34: #{tpu_custom_call.1} parent=31 // pred_check_branch
          %294 = sbr.rel (%p292) target = $region36
        $region35: #{tpu_custom_call.1} parent=31 // pred_region
          %295 = dma.done %s288, 512
        $region36: #{tpu_custom_call.1} parent=31 // pred_fallthru
          _
        %s296 = sand.u32 %s29, 1
        %s297 = scalar_lea.sflag [#allocation6], %s296
        %s298 = sand.u32 %s79, 1
        %s299 = smul.addr %s298, 32
        %s300 = scalar_lea.vmem [#allocation5], %s299
        // Predicated region
        $region37: #{tpu_custom_call.1} parent=31 // pred_check
          %p301 = pneg %p92
        $region38: #{tpu_custom_call.1} parent=31 // pred_check_branch
          %303 = sbr.rel (%p301) target = $region40
        $region39: #{tpu_custom_call.1} parent=31 // pred_region
          %304 = dma.done %s297, 512
        $region40: #{tpu_custom_call.1} parent=31 // pred_fallthru
          _
        %s305 = sand.u32 %s29, 1
        %s306 = scalar_lea.sflag [#allocation6], %s305
        %s307 = sand.u32 %s107, 1
        %s308 = smul.addr %s307, 8
        %s309 = scalar_lea.vmem [#allocation7], %s308
        // Predicated region
        $region41: #{tpu_custom_call.1} parent=31 // pred_check
          %p310 = pneg %p120
        $region42: #{tpu_custom_call.1} parent=31 // pred_check_branch
          %312 = sbr.rel (%p310) target = $region44
        $region43: #{tpu_custom_call.1} parent=31 // pred_region
          %313 = dma.done %s306, 128
        $region44: #{tpu_custom_call.1} parent=31 // pred_fallthru
          _
        %s314 = sand.u32 %s51, 1
        %s315 = scalar_lea.sflag [#allocation3], %s314
        %s316 = sand.u32 %s51, 1
        %s317 = smul.addr %s316, 32
        %s318 = scalar_lea.vmem [#allocation2], %s317
        %p319 = pneg %p64
        %p320 = pneg %p61
        %s321 = sand.u32 %s29, 1
        %s322 = scalar_lea.sflag [#allocation6], %s321
        %s323 = sand.u32 %s79, 1
        %s324 = smul.addr %s323, 32
        %s325 = scalar_lea.vmem [#allocation5], %s324
        %p326 = pneg %p92
        %p327 = pneg %p89
        %s328 = sand.u32 %s29, 1
        %s329 = scalar_lea.sflag [#allocation6], %s328
        %s330 = sand.u32 %s107, 1
        %s331 = smul.addr %s330, 8
        %s332 = scalar_lea.vmem [#allocation7], %s331
        %p333 = pneg %p120
        %p334 = pneg %p117
        %p335 = pneg %p146
        %p336 = pneg %p143
        %s337 = sand.u32 %s133, 1
        %s338 = scalar_lea.sflag [#allocation4], %s337
        %s339 = sand.u32 %s133, 1
        %s340 = smul.addr %s339, 8
        %s341 = scalar_lea.vmem [#allocation8], %s340
        %p342 = pneg %p172
        %p343 = pneg %p169
        %s344 = sand.u32 %s29, 1
        %s345 = scalar_lea.sflag [#allocation10], %s344
        %s346 = sand.u32 %s159, 1
        %s347 = smul.addr %s346, 8
        %s348 = scalar_lea.vmem [#allocation9], %s347
        %p349 = pneg %p198
        %p350 = pneg %p195
        %s351 = sand.u32 %s29, 1
        %s352 = scalar_lea.sflag [#allocation10], %s351
        %s353 = sand.u32 %s185, 1
        %s354 = smul.addr %s353, 8
        %s355 = scalar_lea.vmem [#allocation11], %s354
        %p356 = scmp.eq.s32.totalorder %s34, 0
        // Predicated region
        $region45: #{tpu_custom_call.1} parent=31 // pred_check
          %p357 = pneg %p356
        $region46: #{tpu_custom_call.1} parent=31 // pred_check_branch
          %359 = sbr.rel (%p357) target = $region48
        $region47: #{tpu_custom_call.1} parent=31 // pred_region
          %vm360 = vcmask 80896
          %361 = vst.msk [vmem:[%s341] sm:$0xff] %vm360, 0.0
          %362 = vst.msk [vmem:[%s348] sm:$0xff] %vm360, 0.0
          %363 = vst.msk [vmem:[%s355] sm:$0xff] %vm360, 0.0
        $region48: #{tpu_custom_call.1} parent=31 // pred_fallthru
          _
        %v364 = vld [vmem:[%s309] sm:$0xff]
        %v365 = vld [vmem:[%s291] sm:$0xff]
        %v366 = vld [vmem:[%s300] sm:$0xff]
        %v367 = vsub.f32 %v365, %v366
        %v368 = vmul.f32 %v367, %v367
        %s369 = scalar_lea.vmem %s291, 8 [#allocation2]
        %v370 = vld [vmem:[%s369] sm:$0xff]
        %s371 = scalar_lea.vmem %s300, 8 [#allocation5]
        %v372 = vld [vmem:[%s371] sm:$0xff]
        %v373 = vsub.f32 %v370, %v372
        %v374 = vmul.f32 %v373, %v373
        %v375 = vadd.f32 %v368, %v374
        %vm376 = vcmp.gt.f32.partialorder %v370, %v365
        %vm377 = vcmp.gt.f32.partialorder %v372, %v366
        %v378 = vsel %vm377, %v370, %v365
        %v379 = vsel %vm376, %v372, %v366
        %v380 = vsel %vm376, %v370, %v365
        %v381 = vsel %vm377, %v372, %v366
        %s382 = scalar_lea.vmem %s291, 16 [#allocation2]
        %v383 = vld [vmem:[%s382] sm:$0xff]
        %s384 = scalar_lea.vmem %s300, 16 [#allocation5]
        %v385 = vld [vmem:[%s384] sm:$0xff]
        %v386 = vsub.f32 %v383, %v385
        %v387 = vmul.f32 %v386, %v386
        %v388 = vadd.f32 %v375, %v387
        %vm389 = vcmp.gt.f32.partialorder %v383, %v380
        %vm390 = vcmp.gt.f32.partialorder %v385, %v381
        %v391 = vsel %vm390, %v383, %v378
        %v392 = vsel %vm389, %v385, %v379
        %v393 = vsel %vm389, %v383, %v380
        %v394 = vsel %vm390, %v385, %v381
        %s395 = scalar_lea.vmem %s291, 24 [#allocation2]
        %v396 = vld [vmem:[%s395] sm:$0xff]
        %s397 = scalar_lea.vmem %s300, 24 [#allocation5]
        %v398 = vld [vmem:[%s397] sm:$0xff]
        %v399 = vsub.f32 %v396, %v398
        %v400 = vmul.f32 %v399, %v399
        %v401 = vadd.f32 %v388, %v400
        %vm402 = vcmp.gt.f32.partialorder %v396, %v393
        %vm403 = vcmp.gt.f32.partialorder %v398, %v394
        %v404 = vsel %vm403, %v396, %v391
        %v405 = vsel %vm402, %v398, %v392
        %v406 = vsel %vm402, %v396, %v393
        %v407 = vsel %vm403, %v398, %v394
        %v408 = vsub.f32 %v365, %v406
        %v409 = vmul.f32 %v408, 1.442695
        %v410 = vpow.pop %v409
        %v411 = vadd.f32 %v410, 0.0
        %v412 = vsub.f32 %v366, %v407
        %v413 = vmul.f32 %v412, 1.442695
        %v414 = vpow.pop %v413
        %v415 = vadd.f32 %v414, 0.0
        %v416 = vsub.f32 %v370, %v406
        %v417 = vmul.f32 %v416, 1.442695
        %v418 = vpow.pop %v417
        %v419 = vadd.f32 %v411, %v418
        %v420 = vsub.f32 %v372, %v407
        %v421 = vmul.f32 %v420, 1.442695
        %v422 = vpow.pop %v421
        %v423 = vadd.f32 %v415, %v422
        %v424 = vsub.f32 %v383, %v406
        %v425 = vmul.f32 %v424, 1.442695
        %v426 = vpow.pop %v425
        %v427 = vadd.f32 %v419, %v426
        %v428 = vsub.f32 %v385, %v407
        %v429 = vmul.f32 %v428, 1.442695
        %v430 = vpow.pop %v429
        %v431 = vadd.f32 %v423, %v430
        %v432 = vsub.f32 %v396, %v406
        %v433 = vmul.f32 %v432, 1.442695
        %v434 = vpow.pop %v433
        %v435 = vadd.f32 %v427, %v434
        %v436 = vsub.f32 %v398, %v407
        %v437 = vmul.f32 %v436, 1.442695
        %v438 = vpow.pop %v437
        %v439 = vadd.f32 %v431, %v438
        %v440 = vlog2.pop %v435
        %v441 = vmul.f32 %v440, 0.6931472
        %v442 = vadd.f32 %v406, %v441
        %v443 = vlog2.pop %v439
        %v444 = vmul.f32 %v443, 0.6931472
        %v445 = vadd.f32 %v407, %v444
        %v446 = vld [vmem:[%s341] sm:$0xff]
        %v447 = vmul.f32 %v401, %v364
        %v448 = vadd.f32 %v447, 0.0
        %v449 = vmul.f32 %v448, 0.25
        %v450 = vadd.f32 %v446, %v449
        %vm451 = vcmask 80896
        %452 = vst.msk [vmem:[%s341] sm:$0xff] %vm451, %v450
        %v453 = vld [vmem:[%s348] sm:$0xff]
        %v454 = vsub.f32 %v442, %v404
        %v455 = vmul.f32 %v454, %v364
        %v456 = vadd.f32 %v455, 0.0
        %v457 = vadd.f32 %v453, %v456
        %458 = vst.msk [vmem:[%s348] sm:$0xff] %vm451, %v457
        %v459 = vld [vmem:[%s355] sm:$0xff]
        %v460 = vsub.f32 %v445, %v405
        %v461 = vmul.f32 %v460, %v364
        %v462 = vadd.f32 %v461, 0.0
        %v463 = vadd.f32 %v459, %v462
        %464 = vst.msk [vmem:[%s355] sm:$0xff] %vm451, %v463
        %s465 = sand.u32 %s133, 1
        %s466 = scalar_lea.sflag [#allocation4], %s465
        %s467 = sand.u32 %s133, 1
        %s468 = smul.addr %s467, 8
        %s469 = scalar_lea.vmem [#allocation8], %s468
        %s470 = sand.u32 %s29, 1
        %s471 = scalar_lea.sflag [#allocation10], %s470
        %s472 = sand.u32 %s159, 1
        %s473 = smul.addr %s472, 8
        %s474 = scalar_lea.vmem [#allocation9], %s473
        %s475 = sand.u32 %s29, 1
        %s476 = scalar_lea.sflag [#allocation10], %s475
        %s477 = sand.u32 %s185, 1
        %s478 = smul.addr %s477, 8
        %s479 = scalar_lea.vmem [#allocation11], %s478
        // Predicated region
        $region49: #{tpu_custom_call.1} parent=31 // pred_check
          %p480 = pneg %p143
        $region50: #{tpu_custom_call.1} parent=31 // pred_check_branch
          %482 = sbr.rel (%p480) target = $region52
        $region51: #{tpu_custom_call.1} parent=31 // pred_region
          %s484 = ssub.s32 128, 128
          %485 = vsyncadd %s466, %s484
          %s486 = smul.addr %s33, 128
          %s487 = scalar_lea.hbm %s3, %s486
          %s489 = sshll.u32 %s469, 4
          %s490 = int_to_ptr.vmem [resolvable:$true] %s489
          %492 = dma.vmem_to_hbm [thread:$0]  %s490, 128, %s487, %s466
        $region52: #{tpu_custom_call.1} parent=31 // pred_fallthru
          _
        // Predicated region
        $region53: #{tpu_custom_call.1} parent=31 // pred_check
          %p493 = pneg %p169
        $region54: #{tpu_custom_call.1} parent=31 // pred_check_branch
          %495 = sbr.rel (%p493) target = $region56
        $region55: #{tpu_custom_call.1} parent=31 // pred_region
          %s497 = ssub.s32 128, 128
          %498 = vsyncadd %s471, %s497
          %s499 = smul.addr %s33, 128
          %s500 = scalar_lea.hbm %s4, %s499
          %s502 = sshll.u32 %s474, 4
          %s503 = int_to_ptr.vmem [resolvable:$true] %s502
          %505 = dma.vmem_to_hbm [thread:$0]  %s503, 128, %s500, %s471
        $region56: #{tpu_custom_call.1} parent=31 // pred_fallthru
          _
        // Predicated region
        $region57: #{tpu_custom_call.1} parent=31 // pred_check
          %p506 = pneg %p195
        $region58: #{tpu_custom_call.1} parent=31 // pred_check_branch
          %508 = sbr.rel (%p506) target = $region60
        $region59: #{tpu_custom_call.1} parent=31 // pred_region
          %s510 = ssub.s32 128, 128
          %511 = vsyncadd %s476, %s510
          %s512 = smul.addr %s33, 128
          %s513 = scalar_lea.hbm %s5, %s512
          %s515 = sshll.u32 %s479, 4
          %s516 = int_to_ptr.vmem [resolvable:$true] %s515
          %518 = dma.vmem_to_hbm [thread:$0]  %s516, 128, %s513, %s476
        $region60: #{tpu_custom_call.1} parent=31 // pred_fallthru
          _
      $region32: #{tpu_custom_call.1} parent=5 // pred_fallthru
        _
      %p519 = scmp.le.s32.totalorder 2, %s24
      // Predicated region
      $region61: #{tpu_custom_call.1} parent=5 // pred_check
        %p520 = pneg %p519
      $region62: #{tpu_custom_call.1} parent=5 // pred_check_branch
        %522 = sbr.rel (%p520) target = $region64
      $region63: #{tpu_custom_call.1} parent=5 // pred_region
        %s523 = ssub.s32 %s24, 2
        // Predicated region
        $region65: #{tpu_custom_call.1} parent=63 // pred_check
          %p524 = pneg %p149
        $region66: #{tpu_custom_call.1} parent=63 // pred_check_branch
          %526 = sbr.rel (%p524) target = $region68
        $region67: #{tpu_custom_call.1} parent=63 // pred_region
          %s527 = sand.u32 %s134, 1
          %s528 = scalar_lea.sflag [#allocation4], %s527
          %s529 = sand.u32 %s134, 1
          %s530 = smul.addr %s529, 8
          %s531 = scalar_lea.vmem [#allocation8], %s530
          %532 = dma.done %s528, 128
        $region68: #{tpu_custom_call.1} parent=63 // pred_fallthru
          _
        // Predicated region
        $region69: #{tpu_custom_call.1} parent=63 // pred_check
          %p533 = pneg %p175
        $region70: #{tpu_custom_call.1} parent=63 // pred_check_branch
          %535 = sbr.rel (%p533) target = $region72
        $region71: #{tpu_custom_call.1} parent=63 // pred_region
          %s536 = sand.u32 %s30, 1
          %s537 = scalar_lea.sflag [#allocation10], %s536
          %s538 = sand.u32 %s160, 1
          %s539 = smul.addr %s538, 8
          %s540 = scalar_lea.vmem [#allocation9], %s539
          %541 = dma.done %s537, 128
        $region72: #{tpu_custom_call.1} parent=63 // pred_fallthru
          _
        // Predicated region
        $region73: #{tpu_custom_call.1} parent=63 // pred_check
          %p542 = pneg %p201
        $region74: #{tpu_custom_call.1} parent=63 // pred_check_branch
          %544 = sbr.rel (%p542) target = $region76
        $region75: #{tpu_custom_call.1} parent=63 // pred_region
          %s545 = sand.u32 %s30, 1
          %s546 = scalar_lea.sflag [#allocation10], %s545
          %s547 = sand.u32 %s186, 1
          %s548 = smul.addr %s547, 8
          %s549 = scalar_lea.vmem [#allocation11], %s548
          %550 = dma.done %s546, 128
        $region76: #{tpu_custom_call.1} parent=63 // pred_fallthru
          _
      $region64: #{tpu_custom_call.1} parent=5 // pred_fallthru
        _
    $region6: #{tpu_custom_call.1} parent=1 // loop_footer
      %s28 = sadd.s32 1, %s24
    $region7: #{tpu_custom_call.1} parent=1 // loop_footer_branch
      %23 = sbr.rel target = $region3
    $region8: #{tpu_custom_call.1} parent=1 // loop_exit
      _
    %551 = vsyncpa [#allocation3], 1
    %s552 = scalar_lea.sflag [#allocation3], 1
    %553 = vsyncpa %s552, 1
    %554 = vsyncpa [#allocation6], 1
    %s555 = scalar_lea.sflag [#allocation6], 1
    %556 = vsyncpa %s555, 1
    %557 = vsyncpa [#allocation4], 1
    %s558 = scalar_lea.sflag [#allocation4], 1
    %559 = vsyncpa %s558, 1
    %560 = vsyncpa [#allocation10], 1
    %s561 = scalar_lea.sflag [#allocation10], 1
    %562 = vsyncpa %s561, 1

</llo_original>
